<compile_context>
chip_gen: v5e
topology: v5e:2x2
jax: 0.10.0
libtpu: 0.0.40
codegen_flags: <defaults>
</compile_context>

<pallas_src>
import functools

import jax
import jax.numpy as jnp
from jax.experimental import pallas as pl
from jax.experimental.pallas import tpu as pltpu


# splitmix32-style finalizer constants
_GOLDEN = 0x9E3779B9
_M1 = 0x85EBCA6B
_M2 = 0xC2B2AE35


# --------------------------------------------------------------------------
# Kernels
# --------------------------------------------------------------------------
def _embed_kernel(x_ref, pe_ref, o_ref):
    # x_ref / o_ref: (Bt, S, D) block; pe_ref: (S, D) = rows [0:S) of the table
    o_ref[...] = x_ref[...] + pe_ref[...][None].astype(x_ref.dtype)


def _embed_dropout_kernel(seed_ref, x_ref, pe_ref, o_ref, *, p):
    # Training path: positional add + inverted dropout.
    # Keep mask from a per-element counter hash -> single uint32 compare.
    Bt, S, D = x_ref.shape
    b = pl.program_id(0)

    y = x_ref[...] + pe_ref[...][None].astype(x_ref.dtype)          # (Bt, S, D)

    # Globally-unique per-element counter across the full [B, S, D] output.
    i0 = jax.lax.broadcasted_iota(jnp.uint32, (Bt, S, D), 0)
    i1 = jax.lax.broadcasted_iota(jnp.uint32, (Bt, S, D), 1)
    i2 = jax.lax.broadcasted_iota(jnp.uint32, (Bt, S, D), 2)
    ctr = (b.astype(jnp.uint32) * jnp.uint32(Bt * S * D)
           + i0 * jnp.uint32(S * D) + i1 * jnp.uint32(D) + i2)

    # splitmix32 hash of (seed, counter) -> well-mixed uint32 stream.
    z = ctr + seed_ref[0].astype(jnp.uint32) * jnp.uint32(_GOLDEN)
    z = (z ^ (z >> jnp.uint32(16))) * jnp.uint32(_M1)
    z = (z ^ (z >> jnp.uint32(13))) * jnp.uint32(_M2)
    z = z ^ (z >> jnp.uint32(16))

    threshold = jnp.uint32(min(int(round(p * 2.0 ** 32)), 0xFFFFFFFF))
    keep = z >= threshold                                            # drop w.p. ~p
    scale = jnp.asarray(1.0 / (1.0 - p), dtype=y.dtype)
    o_ref[...] = jnp.where(keep, y * scale, jnp.zeros_like(y)).astype(o_ref.dtype)


# --------------------------------------------------------------------------
# Wrapper (the "Embedding" module forward)
# --------------------------------------------------------------------------
def _pick_batch_tile(B, S, D, itemsize, target_bytes=4 * 1024 * 1024):
    """Largest Bt dividing B with Bt*S*D*itemsize <= target_bytes (>= 1)."""
    per_row = max(S * D * itemsize, 1)
    bt = max(1, min(B, target_bytes // per_row))
    while B % bt != 0:
        bt -= 1
    return bt


def embedding_forward(sequence, pe, *, dropout_p=0.1, training=False, seed=0):
    """sequence: [B, S, D], pe: [max_len, D]."""
    B, S, D = sequence.shape
    max_len, d_model = pe.shape
    assert d_model == D and S <= max_len

    itemsize = jnp.dtype(sequence.dtype).itemsize
    Bt = _pick_batch_tile(B, S, D, itemsize)
    grid = (B // Bt,)
    out_shape = jax.ShapeDtypeStruct((B, S, D), sequence.dtype)

    compiler_params = pltpu.CompilerParams(
        dimension_semantics=("parallel",),        # safe: grid steps independent
        vmem_limit_bytes=32 * 1024 * 1024,        # fits v5e default-gap & v7x 64 MiB
    )

    if (not training) or dropout_p <= 0.0:
        # eval mode: dropout is identity
        x_spec = pl.BlockSpec((Bt, S, D), lambda g: (g, 0, 0))
        pe_spec = pl.BlockSpec((S, D), lambda g: (0, 0))
        o_spec = pl.BlockSpec((Bt, S, D), lambda g: (g, 0, 0))
        return pl.pallas_call(
            _embed_kernel,
            out_shape=out_shape,
            grid_spec=pltpu.PrefetchScalarGridSpec(
                num_scalar_prefetch=0,
                grid=grid,
                in_specs=[x_spec, pe_spec],
                out_specs=o_spec,
            ),
            compiler_params=compiler_params,
        )(sequence, pe)

    # training mode: inverted dropout (matches torch Dropout semantics, not
    # torch's RNG stream).  Caller should fold a step counter into `seed`.
    seed_arr = jnp.asarray([seed], dtype=jnp.int32)
    x_spec = pl.BlockSpec((Bt, S, D), lambda g, seed_ref: (g, 0, 0))
    pe_spec = pl.BlockSpec((S, D), lambda g, seed_ref: (0, 0))
    o_spec = pl.BlockSpec((Bt, S, D), lambda g, seed_ref: (g, 0, 0))
    return pl.pallas_call(
        functools.partial(_embed_dropout_kernel, p=float(dropout_p)),
        out_shape=out_shape,
        grid_spec=pltpu.PrefetchScalarGridSpec(
            num_scalar_prefetch=1,
            grid=grid,
            in_specs=[x_spec, pe_spec],
            out_specs=o_spec,
        ),
        compiler_params=compiler_params,
    )(seed_arr, sequence, pe)


# --------------------------------------------------------------------------
# Main
# --------------------------------------------------------------------------
if __name__ == "__main__":
    # Module config (small, TPU-friendly): d_model = input_dim = 128, max_len = 512
    B, S, D, MAX_LEN = 2, 8, 128, 512
    P = 0.1

    key = jax.random.PRNGKey(0)
    k_pe, k_x = jax.random.split(key)

    # Parameter init: torch.nn.init.normal_(pe, std=0.02)
    pe = (0.02 * jax.random.normal(k_pe, (MAX_LEN, D))).astype(jnp.float32)
    sequence = jax.random.normal(k_x, (B, S, D), dtype=jnp.float32)

    # Eval-mode forward (dropout = identity) vs pure-JAX reference.
    out = embedding_forward(sequence, pe, dropout_p=P, training=False)
    out = jax.block_until_ready(out)
    ref = sequence + pe[None, :S, :]
    assert out.shape == (B, S, D)
    assert jnp.allclose(out, ref, atol=1e-6), "eval mismatch vs reference"

    # Training-mode forward: kept elements must equal ref / (1 - p), dropped are 0.
    out_train = embedding_forward(sequence, pe, dropout_p=P, training=True, seed=42)
    out_train = jax.block_until_ready(out_train)
    assert out_train.shape == (B, S, D)
    scaled_ref = ref / (1.0 - P)
    recon = jnp.where(out_train != 0.0, out_train, scaled_ref)
    assert jnp.allclose(recon, scaled_ref, atol=1e-5), "dropout values mismatch"
    keep_frac = jnp.mean((out_train != 0.0).astype(jnp.float32))
    assert 0.75 <= float(keep_frac) <= 1.0, "dropout keep fraction implausible"

    print("KERNEL_OK")
</pallas_src>

<mosaic_0001>
module attributes {stable_mosaic.version = 11 : i64} {
  func.func @_embed_kernel(%arg0: i32, %arg1: memref<2x8x128xf32, #tpu.memory_space<vmem>>, %arg2: memref<8x128xf32, #tpu.memory_space<vmem>>, %arg3: memref<2x8x128xf32, #tpu.memory_space<vmem>>) attributes {dimension_semantics = [#tpu.dimension_semantics<parallel>], iteration_bounds = array<i64: 1>, scalar_prefetch = 0 : i64, scratch_operands = 0 : i64, tpu.core_type = #tpu.core_type<tc>, window_params = [{transform_indices = @transform_0, window_bounds = array<i64: 2, 8, 128>}, {transform_indices = @transform_1, window_bounds = array<i64: 8, 128>}, {transform_indices = @transform_2, window_bounds = array<i64: 2, 8, 128>}]} {
    %c0 = arith.constant 0 : index
    %c0_0 = arith.constant 0 : index
    %c0_1 = arith.constant 0 : index
    %0 = vector.load %arg1[%c0, %c0_0, %c0_1] : memref<2x8x128xf32, #tpu.memory_space<vmem>>, vector<2x8x128xf32>
    %c0_2 = arith.constant 0 : index
    %c0_3 = arith.constant 0 : index
    %1 = vector.load %arg2[%c0_2, %c0_3] : memref<8x128xf32, #tpu.memory_space<vmem>>, vector<8x128xf32>
    %2 = vector.shape_cast %1 : vector<8x128xf32> to vector<1x8x128xf32>
    %3 = vector.broadcast %2 : vector<1x8x128xf32> to vector<2x8x128xf32>
    %4 = arith.addf %0, %3 : vector<2x8x128xf32>
    %c0_4 = arith.constant 0 : index
    %c0_5 = arith.constant 0 : index
    %c0_6 = arith.constant 0 : index
    %5 = vector.load %arg3[%c0_4, %c0_5, %c0_6] : memref<2x8x128xf32, #tpu.memory_space<vmem>>, vector<2x8x128xf32>
    tpu.vector_store %arg3[%c0_4, %c0_5, %c0_6], %4 {strides = array<i32>} : memref<2x8x128xf32, #tpu.memory_space<vmem>>, vector<2x8x128xf32>,
    return
  }
  func.func @transform_0(%arg0: i32) -> (i32, i32, i32) {
    %c0_i32 = arith.constant 0 : i32
    %c0_i32_0 = arith.constant 0 : i32
    %c0_i32_1 = arith.constant 0 : i32
    return %arg0, %c0_i32, %c0_i32_0 : i32, i32, i32
  }
  func.func @transform_1(%arg0: i32) -> (i32, i32) {
    %c0_i32 = arith.constant 0 : i32
    %c0_i32_0 = arith.constant 0 : i32
    %c0_i32_1 = arith.constant 0 : i32
    return %c0_i32, %c0_i32_0 : i32, i32
  }
  func.func @transform_2(%arg0: i32) -> (i32, i32, i32) {
    %c0_i32 = arith.constant 0 : i32
    %c0_i32_0 = arith.constant 0 : i32
    %c0_i32_1 = arith.constant 0 : i32
    return %arg0, %c0_i32, %c0_i32_0 : i32, i32, i32
  }
}

</mosaic_0001>

<llo_original>
// kernel: tpu_custom_call.1
$region0: #{tpu_custom_call.1}
  #allocation0 [shape = 'u32[]', space=smem, size = 0x4, offset = 0x4, fixed_abs, tag = 'smem constant byte address 0x4 - core index']
  #allocation1 [shape = 'u32[72,128]{1,0:T(1,128)}', space=vmem, size = 0x9000, scoped, tag = 'internal scratch']
  %s0 = inlined_call_operand.hbm [shape: f32[2,8,128], index: 0, kind: input, shape index: {}]
  %s1 = inlined_call_operand.hbm [shape: f32[512,128], index: 1, kind: input, shape index: {}]
  %s2 = inlined_call_operand.hbm [shape: f32[2,8,128], index: 2, kind: output, shape index: {}]
  %s3 = sld [smem:[#allocation0]]
  $region26: #{tpu_custom_call.1} parent=0
    _
  %s5 = ssub.s32 1, %s3
  %s6 = scalar_select 0, %s5, %s3
  $region1: #{tpu_custom_call.1} parent=0
    #allocation2 [shape = 'u8[8192]{0}', space=vmem, size = 0x2000, scoped, tag = 'input window, operand 0, single buffered']
    #allocation3 [shape = 's32[1]{0}', space=sflag, size = 0x4, scoped, tag = 'scoped memory for tpu_custom_call.1']
    #allocation4 [shape = 's32[1]{0}', space=sflag, size = 0x4, scoped, tag = 'scoped memory for tpu_custom_call.1']
    #allocation5 [shape = 'u8[4096]{0}', space=vmem, size = 0x1000, scoped, tag = 'input window, operand 1, single buffered']
    #allocation6 [shape = 's32[1]{0}', space=sflag, size = 0x4, scoped, tag = 'scoped memory for tpu_custom_call.1']
    #allocation7 [shape = 'u8[8192]{0}', space=vmem, size = 0x2000, scoped, tag = 'output window, operand 0, single buffered']
    %7 = vsyncpa [#allocation3], 0
    %8 = vsyncpa [#allocation6], 0
    %9 = vsyncpa [#allocation4], 0
    // Predicated region
    $region2: #{tpu_custom_call.1} parent=1 // pred_check
      _
    $region3: #{tpu_custom_call.1} parent=1 // pred_check_branch
      %11 = sbr.rel (0) target = $region5
    $region4: #{tpu_custom_call.1} parent=1 // pred_region
      %13 = vsyncadd [#allocation3], 0
      %s14 = sshll.u32 %s0, 4
      %s15 = int_to_ptr.hbm [resolvable:$true] %s14
      %s16 = sshll.u32 [#allocation2], 4
      %s17 = int_to_ptr.vmem [resolvable:$true] %s16
      %22 = dma.hbm_to_vmem [thread:$0]  %s15, 256, %s17, [#allocation3], 128, 128, 8
    $region5: #{tpu_custom_call.1} parent=1 // pred_fallthru
      _
    // Predicated region
    $region6: #{tpu_custom_call.1} parent=1 // pred_check
      _
    $region7: #{tpu_custom_call.1} parent=1 // pred_check_branch
      %24 = sbr.rel (0) target = $region9
    $region8: #{tpu_custom_call.1} parent=1 // pred_region
      %26 = vsyncadd [#allocation6], 0
      %s28 = sshll.u32 %s1, 4
      %s29 = int_to_ptr.hbm [resolvable:$true] %s28
      %s30 = sshll.u32 [#allocation5], 4
      %s31 = int_to_ptr.vmem [resolvable:$true] %s30
      %33 = dma.hbm_to_vmem [thread:$0]  %s29, 128, %s31, [#allocation6]
    $region9: #{tpu_custom_call.1} parent=1 // pred_fallthru
      _
    // Predicated region
    $region10: #{tpu_custom_call.1} parent=1 // pred_check
      _
    $region11: #{tpu_custom_call.1} parent=1 // pred_check_branch
      %35 = sbr.rel (0) target = $region13
    $region12: #{tpu_custom_call.1} parent=1 // pred_region
      %37 = dma.done [#allocation3], 256
    $region13: #{tpu_custom_call.1} parent=1 // pred_fallthru
      _
    // Predicated region
    $region14: #{tpu_custom_call.1} parent=1 // pred_check
      _
    $region15: #{tpu_custom_call.1} parent=1 // pred_check_branch
      %39 = sbr.rel (0) target = $region17
    $region16: #{tpu_custom_call.1} parent=1 // pred_region
      %41 = dma.done [#allocation6], 128
    $region17: #{tpu_custom_call.1} parent=1 // pred_fallthru
      _
    %v42 = vld [vmem:[#allocation2] sm:$0xff]
    %v43 = vld [vmem:[#allocation2 + $0x8] sm:$0xff]
    %v44 = vld [vmem:[#allocation5] sm:$0xff]
    %v45 = vadd.f32 %v42, %v44
    %v46 = vadd.f32 %v43, %v44
    %47 = vst [vmem:[#allocation7] sm:$0xff] %v45
    %48 = vst [vmem:[#allocation7 + $0x8] sm:$0xff] %v46
    // Predicated region
    $region18: #{tpu_custom_call.1} parent=1 // pred_check
      _
    $region19: #{tpu_custom_call.1} parent=1 // pred_check_branch
      %50 = sbr.rel (0) target = $region21
    $region20: #{tpu_custom_call.1} parent=1 // pred_region
      %52 = vsyncadd [#allocation4], 0
      %s53 = sshll.u32 [#allocation7], 4
      %s54 = int_to_ptr.vmem [resolvable:$true] %s53
      %s55 = sshll.u32 %s2, 4
      %s56 = int_to_ptr.hbm [resolvable:$true] %s55
      %61 = dma.vmem_to_hbm [thread:$0]  %s54, 256, %s56, [#allocation4], 128, 128, 8
    $region21: #{tpu_custom_call.1} parent=1 // pred_fallthru
      _
    // Predicated region
    $region22: #{tpu_custom_call.1} parent=1 // pred_check
      _
    $region23: #{tpu_custom_call.1} parent=1 // pred_check_branch
      %63 = sbr.rel (0) target = $region25
    $region24: #{tpu_custom_call.1} parent=1 // pred_region
      %65 = dma.done [#allocation4], 256
    $region25: #{tpu_custom_call.1} parent=1 // pred_fallthru
      _
    %66 = vsyncpa [#allocation3], 1
    %67 = vsyncpa [#allocation6], 1
    %68 = vsyncpa [#allocation4], 1

</llo_original>
